<compile_context>
chip_gen: v5e
topology: v5e:2x2
jax: 0.10.0
libtpu: 0.0.40
codegen_flags: <defaults>
</compile_context>

<pallas_src>
import jax
import jax.numpy as jnp
from jax.experimental import pallas as pl
from jax.experimental.pallas import tpu as pltpu

# CartPole-v0: observation dim 4, action dim 2
N_STATE = 4
N_ACTION = 2
H1 = 64
H1P = 128            # fc1 width zero-padded to a full lane width
H2 = 256
LANE = 128           # fc3 output zero-padded to a full lane width
SMALL_BATCH = 128    # <= this: gridless single-block (act-loop / latency path)


def _round_up(n, m):
    return -(-n // m) * m


# ----------------------------------------------------------------------------
# Kernel bodies
# ----------------------------------------------------------------------------
def _mlp_forward(x, w1, b1, w2, b2, w3p, b3p):
    """Shared MLP body.

    x: [B, 4] f32; w1/b1 padded to H1P (f32); w2 [H1P, H2] bf16; b2 f32;
    w3p [H2, LANE] bf16 (zero-padded cols); b3p [1, LANE] f32 (zero-padded).
    Returns q [B, LANE] f32 with lanes >= N_ACTION exactly zero.
    """
    # fc1 as unrolled VPU broadcast-FMAs (K = 4 is degenerate for the MXU),
    # kept in f32 (v5e has no bf16 VALU).
    h1 = b1                                              # [1, H1P]
    for k in range(N_STATE):
        h1 = h1 + x[:, k:k + 1] * w1[k:k + 1, :]         # [B, H1P]
    h1 = jnp.maximum(h1, 0.0)                            # ReLU
    # fc2 / fc3 on the MXU: bf16 operands, f32 accumulation.
    h2 = jnp.dot(h1.astype(jnp.bfloat16), w2,
                 preferred_element_type=jnp.float32) + b2
    h2 = jnp.maximum(h2, 0.0)                            # ReLU, [B, H2]
    q = jnp.dot(h2.astype(jnp.bfloat16), w3p,
                preferred_element_type=jnp.float32) + b3p
    return q                                             # [B, LANE]


def qnetwork_kernel(x_ref, w1_ref, b1_ref, w2_ref, b2_ref, w3_ref, b3_ref,
                    out_ref):
    q = _mlp_forward(x_ref[...], w1_ref[...], b1_ref[...], w2_ref[...],
                     b2_ref[...], w3_ref[...], b3_ref[...])      # [B, LANE]
    # Fused greedy action (ties -> 0, matching argmax), packed into the
    # otherwise-zero lane N_ACTION so the kernel emits a SINGLE lane-dense
    # f32 block (no second broadcast int32 action block).
    act = (q[:, 1:2] > q[:, 0:1]).astype(jnp.float32)            # [B, 1]
    lane = jax.lax.broadcasted_iota(jnp.int32, q.shape, 1)       # [B, LANE]
    out_ref[...] = jnp.where(lane == N_ACTION, act, q)


def ddqn_td_kernel(x_ref,
                   w1o_ref, b1o_ref, w2o_ref, b2o_ref, w3o_ref, b3o_ref,
                   w1t_ref, b1t_ref, w2t_ref, b2t_ref, w3t_ref, b3t_ref,
                   out_ref):
    """Fused DDQN bootstrap: a* = argmax_a Q_online(s'); emit Q_target(s', a*).

    Only the reduced per-row values are written back (lane 0 = TD value,
    lane 1 = a*, other lanes zero) instead of two full padded Q tensors.
    """
    x = x_ref[...]
    q_on = _mlp_forward(x, w1o_ref[...], b1o_ref[...], w2o_ref[...],
                        b2o_ref[...], w3o_ref[...], b3o_ref[...])
    q_tg = _mlp_forward(x, w1t_ref[...], b1t_ref[...], w2t_ref[...],
                        b2t_ref[...], w3t_ref[...], b3t_ref[...])
    astar = q_on[:, 1:2] > q_on[:, 0:1]                          # [B, 1] bool
    td = jnp.where(astar, q_tg[:, 1:2], q_tg[:, 0:1])            # [B, 1]
    lane = jax.lax.broadcasted_iota(jnp.int32, q_on.shape, 1)
    out_ref[...] = jnp.where(lane == 0, td,
                             jnp.where(lane == 1,
                                       astar.astype(jnp.float32), 0.0))


# ----------------------------------------------------------------------------
# Parameter preparation (padding / dtype conversion done ONCE, not per call)
# ----------------------------------------------------------------------------
def init_params(key):
    """Raw torch-like params: Linear init uniform(+-1/sqrt(fan_in)).

    Weights stored [in_features, out_features]; biases [1, out_features]."""
    ks = jax.random.split(key, 6)

    def linear(kw, kb, fan_in, fan_out):
        bound = 1.0 / jnp.sqrt(jnp.float32(fan_in))
        w = jax.random.uniform(kw, (fan_in, fan_out), jnp.float32,
                               -bound, bound)
        b = jax.random.uniform(kb, (1, fan_out), jnp.float32, -bound, bound)
        return w, b

    w1, b1 = linear(ks[0], ks[1], N_STATE, H1)
    w2, b2 = linear(ks[2], ks[3], H1, H2)
    w3, b3 = linear(ks[4], ks[5], H2, N_ACTION)
    return (w1, b1, w2, b2, w3, b3)


def prepare_params(raw):
    """Pad/convert once (at init or target-network sync time):
       w1/b1 -> H1P columns (f32); w2 -> H1P rows, bf16; w3/b3 -> LANE cols,
       w3 bf16. Zero padding keeps the forward numerically identical."""
    w1, b1, w2, b2, w3, b3 = raw
    w1p = jnp.pad(w1, ((0, 0), (0, H1P - H1)))
    b1p = jnp.pad(b1, ((0, 0), (0, H1P - H1)))
    w2p = jnp.pad(w2, ((0, H1P - H1), (0, 0))).astype(jnp.bfloat16)
    w3p = jnp.pad(w3, ((0, 0), (0, LANE - N_ACTION))).astype(jnp.bfloat16)
    b3p = jnp.pad(b3, ((0, 0), (0, LANE - N_ACTION)))
    return (w1p, b1p, w2p, b2, w3p, b3p)


# ----------------------------------------------------------------------------
# Wrappers
# ----------------------------------------------------------------------------
def _batch_tiling(B, batch_tile):
    # Cap the tile so there are always >= 2 grid steps (v7x 2-TC split) while
    # keeping tiles as large as possible (amortize ~0.35us per grid step).
    tile = max(8, min(batch_tile, _round_up(-(-B // 2), 8)))
    n_tiles = -(-B // tile)
    return tile, n_tiles, n_tiles * tile


_WEIGHT_SPECS = [
    pl.BlockSpec((N_STATE, H1P), lambda i: (0, 0)),
    pl.BlockSpec((1, H1P), lambda i: (0, 0)),
    pl.BlockSpec((H1P, H2), lambda i: (0, 0)),
    pl.BlockSpec((1, H2), lambda i: (0, 0)),
    pl.BlockSpec((H2, LANE), lambda i: (0, 0)),
    pl.BlockSpec((1, LANE), lambda i: (0, 0)),
]


def qnetwork_forward(x, params, *, batch_tile=512):
    """Returns (Q[B, n_action] f32, greedy_action[B] int32).

    params: prepared tuple from prepare_params().
    batch_tile: rows per grid step on the training-batch path. 512 is a good
    default on v5e, v6e and v7x alike (per-tile VMEM < 1 MB, so larger tiles
    simply amortize per-step overhead); it is automatically capped so that at
    least 2 grid steps exist once B > SMALL_BATCH."""
    w1, b1, w2, b2, w3, b3 = params
    B = x.shape[0]

    if B <= SMALL_BATCH:
        # select_action()-style path: latency bound; one gridless VMEM block.
        vmem = pl.BlockSpec(memory_space=pltpu.MemorySpace.VMEM)
        out = pl.pallas_call(
            qnetwork_kernel,
            out_shape=jax.ShapeDtypeStruct((B, LANE), jnp.float32),
            in_specs=[vmem] * 7,
            out_specs=vmem,
        )(x, w1, b1, w2, b2, w3, b3)
        return out[:, :N_ACTION], out[:, N_ACTION].astype(jnp.int32)

    # Training-batch path: grid over batch only; weights stay VMEM-resident
    # via constant index_maps; batch axis is "parallel" for megacore sharding.
    tile, n_tiles, Bp = _batch_tiling(B, batch_tile)
    xb = jnp.pad(x, ((0, Bp - B), (0, 0))) if Bp != B else x
    out = pl.pallas_call(
        qnetwork_kernel,
        out_shape=jax.ShapeDtypeStruct((Bp, LANE), jnp.float32),
        grid=(n_tiles,),
        in_specs=[pl.BlockSpec((tile, N_STATE), lambda i: (i, 0))]
                 + list(_WEIGHT_SPECS),
        out_specs=pl.BlockSpec((tile, LANE), lambda i: (i, 0)),
        compiler_params=pltpu.CompilerParams(
            dimension_semantics=("parallel",)),
    )(xb, w1, b1, w2, b2, w3, b3)
    return out[:B, :N_ACTION], out[:B, N_ACTION].astype(jnp.int32)


def ddqn_td_bootstrap(x_next, online_params, target_params, *, batch_tile=512):
    """Single-launch DDQN bootstrap for next-states.

    Returns (Q_target(s', a*)[B] f32, a*[B] int32) where
    a* = argmax_a Q_online(s', a). The full padded Q tensors never leave VMEM."""
    B = x_next.shape[0]

    if B <= SMALL_BATCH:
        vmem = pl.BlockSpec(memory_space=pltpu.MemorySpace.VMEM)
        out = pl.pallas_call(
            ddqn_td_kernel,
            out_shape=jax.ShapeDtypeStruct((B, LANE), jnp.float32),
            in_specs=[vmem] * 13,
            out_specs=vmem,
        )(x_next, *online_params, *target_params)
        return out[:, 0], out[:, 1].astype(jnp.int32)

    tile, n_tiles, Bp = _batch_tiling(B, batch_tile)
    xb = jnp.pad(x_next, ((0, Bp - B), (0, 0))) if Bp != B else x_next
    out = pl.pallas_call(
        ddqn_td_kernel,
        out_shape=jax.ShapeDtypeStruct((Bp, LANE), jnp.float32),
        grid=(n_tiles,),
        in_specs=[pl.BlockSpec((tile, N_STATE), lambda i: (i, 0))]
                 + list(_WEIGHT_SPECS) + list(_WEIGHT_SPECS),
        out_specs=pl.BlockSpec((tile, LANE), lambda i: (i, 0)),
        compiler_params=pltpu.CompilerParams(
            dimension_semantics=("parallel",)),
    )(xb, *online_params, *target_params)
    return out[:B, 0], out[:B, 1].astype(jnp.int32)


def qnetwork_ref(x, raw_params):
    w1, b1, w2, b2, w3, b3 = raw_params
    h1 = jnp.maximum(x @ w1 + b1, 0.0)
    h2 = jnp.maximum(h1 @ w2 + b2, 0.0)
    return h2 @ w3 + b3


# TODO(synk): gym env interaction, replay buffer, epsilon-greedy exploration
# and the training loop are host-side RL logic with no Pallas equivalent; only
# the network forward / greedy action / DDQN bootstrap are implemented.

if __name__ == "__main__":
    key = jax.random.PRNGKey(0)
    k_on, k_tg, k_x, k_xb = jax.random.split(key, 4)

    raw_online = init_params(k_on)
    raw_target = init_params(k_tg)
    online = prepare_params(raw_online)
    target = prepare_params(raw_target)

    # select_action()-style small batch: gridless path with fused argmax.
    x = jax.random.normal(k_x, (8, N_STATE), jnp.float32)
    q, act = qnetwork_forward(x, online)
    q, act = jax.block_until_ready((q, act))
    q_ref = qnetwork_ref(x, raw_online)
    assert q.shape == (8, N_ACTION) and act.shape == (8,)
    # fc2/fc3 operands are bf16 (MXU-native) -> loosened tolerance vs f32 ref.
    assert jnp.allclose(q, q_ref, atol=2e-2, rtol=5e-2), "Q mismatch (small)"
    assert jnp.array_equal(act, jnp.argmax(q, axis=1)), "fused argmax mismatch"

    # Training-style batch: exercises the batch grid (>= 2 parallel tiles).
    B = 256
    xb = jax.random.normal(k_xb, (B, N_STATE), jnp.float32)
    qb, actb = qnetwork_forward(xb, online)
    qb, actb = jax.block_until_ready((qb, actb))
    qb_ref = qnetwork_ref(xb, raw_online)
    assert qb.shape == (B, N_ACTION) and actb.shape == (B,)
    assert jnp.allclose(qb, qb_ref, atol=2e-2, rtol=5e-2), "Q mismatch (batched)"
    assert jnp.array_equal(actb, jnp.argmax(qb, axis=1)), "argmax mismatch (batched)"

    # Fused DDQN bootstrap (single launch, reduced per-row outputs).
    td, astar = ddqn_td_bootstrap(xb, online, target)
    td, astar = jax.block_until_ready((td, astar))
    assert td.shape == (B,) and astar.shape == (B,)
    assert bool(jnp.all((astar == 0) | (astar == 1))), "a* out of range"
    qt_ref = qnetwork_ref(xb, raw_target)
    td_ref = qt_ref[jnp.arange(B), astar]        # gather at the kernel's a*
    assert jnp.allclose(td, td_ref, atol=2e-2, rtol=5e-2), "TD value mismatch"
    # a* must agree with the online greedy action wherever Q0/Q1 are not
    # nearly tied (bf16 rounding could flip exact ties).
    margin = jnp.abs(qb[:, 1] - qb[:, 0]) > 1e-3
    assert bool(jnp.all(jnp.where(margin, astar == actb, True))), "a* mismatch"

    print("KERNEL_OK")
</pallas_src>

<mosaic_0001>
module attributes {stable_mosaic.version = 11 : i64} {
  func.func @qnetwork_kernel(%arg0: memref<8x4xf32, #tpu.memory_space<vmem>>, %arg1: memref<4x128xf32, #tpu.memory_space<vmem>>, %arg2: memref<1x128xf32, #tpu.memory_space<vmem>>, %arg3: memref<128x256xbf16, #tpu.memory_space<vmem>>, %arg4: memref<1x256xf32, #tpu.memory_space<vmem>>, %arg5: memref<256x128xbf16, #tpu.memory_space<vmem>>, %arg6: memref<1x128xf32, #tpu.memory_space<vmem>>, %arg7: memref<8x128xf32, #tpu.memory_space<vmem>>) attributes {dimension_semantics = [], scalar_prefetch = 0 : i64, scratch_operands = 0 : i64, tpu.core_type = #tpu.core_type<tc>} {
    %c0 = arith.constant 0 : index
    %c0_0 = arith.constant 0 : index
    %0 = vector.load %arg0[%c0, %c0_0] : memref<8x4xf32, #tpu.memory_space<vmem>>, vector<8x4xf32>
    %c0_1 = arith.constant 0 : index
    %c0_2 = arith.constant 0 : index
    %1 = vector.load %arg1[%c0_1, %c0_2] : memref<4x128xf32, #tpu.memory_space<vmem>>, vector<4x128xf32>
    %c0_3 = arith.constant 0 : index
    %c0_4 = arith.constant 0 : index
    %2 = vector.load %arg2[%c0_3, %c0_4] : memref<1x128xf32, #tpu.memory_space<vmem>>, vector<1x128xf32>
    %c0_5 = arith.constant 0 : index
    %c0_6 = arith.constant 0 : index
    %3 = vector.load %arg3[%c0_5, %c0_6] : memref<128x256xbf16, #tpu.memory_space<vmem>>, vector<128x256xbf16>
    %c0_7 = arith.constant 0 : index
    %c0_8 = arith.constant 0 : index
    %4 = vector.load %arg4[%c0_7, %c0_8] : memref<1x256xf32, #tpu.memory_space<vmem>>, vector<1x256xf32>
    %c0_9 = arith.constant 0 : index
    %c0_10 = arith.constant 0 : index
    %5 = vector.load %arg5[%c0_9, %c0_10] : memref<256x128xbf16, #tpu.memory_space<vmem>>, vector<256x128xbf16>
    %c0_11 = arith.constant 0 : index
    %c0_12 = arith.constant 0 : index
    %6 = vector.load %arg6[%c0_11, %c0_12] : memref<1x128xf32, #tpu.memory_space<vmem>>, vector<1x128xf32>
    %7 = vector.extract_strided_slice %0 {offsets = [0, 0], sizes = [8, 1], strides = [1, 1]} : vector<8x4xf32> to vector<8x1xf32>
    %8 = vector.extract_strided_slice %1 {offsets = [0, 0], sizes = [1, 128], strides = [1, 1]} : vector<4x128xf32> to vector<1x128xf32>
    %9 = vector.broadcast %7 : vector<8x1xf32> to vector<8x128xf32>
    %10 = vector.broadcast %8 : vector<1x128xf32> to vector<8x128xf32>
    %11 = arith.mulf %9, %10 : vector<8x128xf32>
    %12 = vector.broadcast %2 : vector<1x128xf32> to vector<8x128xf32>
    %13 = arith.addf %12, %11 : vector<8x128xf32>
    %14 = vector.extract_strided_slice %0 {offsets = [0, 1], sizes = [8, 1], strides = [1, 1]} : vector<8x4xf32> to vector<8x1xf32>
    %15 = vector.extract_strided_slice %1 {offsets = [1, 0], sizes = [1, 128], strides = [1, 1]} : vector<4x128xf32> to vector<1x128xf32>
    %16 = vector.broadcast %14 : vector<8x1xf32> to vector<8x128xf32>
    %17 = vector.broadcast %15 : vector<1x128xf32> to vector<8x128xf32>
    %18 = arith.mulf %16, %17 : vector<8x128xf32>
    %19 = arith.addf %13, %18 : vector<8x128xf32>
    %20 = vector.extract_strided_slice %0 {offsets = [0, 2], sizes = [8, 1], strides = [1, 1]} : vector<8x4xf32> to vector<8x1xf32>
    %21 = vector.extract_strided_slice %1 {offsets = [2, 0], sizes = [1, 128], strides = [1, 1]} : vector<4x128xf32> to vector<1x128xf32>
    %22 = vector.broadcast %20 : vector<8x1xf32> to vector<8x128xf32>
    %23 = vector.broadcast %21 : vector<1x128xf32> to vector<8x128xf32>
    %24 = arith.mulf %22, %23 : vector<8x128xf32>
    %25 = arith.addf %19, %24 : vector<8x128xf32>
    %26 = vector.extract_strided_slice %0 {offsets = [0, 3], sizes = [8, 1], strides = [1, 1]} : vector<8x4xf32> to vector<8x1xf32>
    %27 = vector.extract_strided_slice %1 {offsets = [3, 0], sizes = [1, 128], strides = [1, 1]} : vector<4x128xf32> to vector<1x128xf32>
    %28 = vector.broadcast %26 : vector<8x1xf32> to vector<8x128xf32>
    %29 = vector.broadcast %27 : vector<1x128xf32> to vector<8x128xf32>
    %30 = arith.mulf %28, %29 : vector<8x128xf32>
    %31 = arith.addf %25, %30 : vector<8x128xf32>
    %cst = arith.constant 0.000000e+00 : f32
    %32 = vector.broadcast %cst : f32 to vector<8x128xf32>
    %33 = arith.maximumf %31, %32 : vector<8x128xf32>
    %34 = arith.truncf %33 : vector<8x128xf32> to vector<8x128xbf16>
    %cst_13 = arith.constant dense<0.000000e+00> : vector<8x256xf32>
    %35 = tpu.matmul %34, %3, %cst_13 {dimension_numbers = #tpu.dot_dimension_numbers<[1], [0], [0], [1], [0, 0, 1, 1], [], []>} : vector<8x128xbf16>, vector<128x256xbf16>, vector<8x256xf32> -> vector<8x256xf32>
    %36 = vector.broadcast %4 : vector<1x256xf32> to vector<8x256xf32>
    %37 = arith.addf %35, %36 : vector<8x256xf32>
    %cst_14 = arith.constant 0.000000e+00 : f32
    %38 = vector.broadcast %cst_14 : f32 to vector<8x256xf32>
    %39 = arith.maximumf %37, %38 : vector<8x256xf32>
    %40 = arith.truncf %39 : vector<8x256xf32> to vector<8x256xbf16>
    %cst_15 = arith.constant dense<0.000000e+00> : vector<8x128xf32>
    %41 = tpu.matmul %40, %5, %cst_15 {dimension_numbers = #tpu.dot_dimension_numbers<[1], [0], [0], [1], [0, 0, 1, 1], [], []>} : vector<8x256xbf16>, vector<256x128xbf16>, vector<8x128xf32> -> vector<8x128xf32>
    %42 = vector.broadcast %6 : vector<1x128xf32> to vector<8x128xf32>
    %43 = arith.addf %41, %42 : vector<8x128xf32>
    %44 = vector.extract_strided_slice %43 {offsets = [0, 1], sizes = [8, 1], strides = [1, 1]} : vector<8x128xf32> to vector<8x1xf32>
    %45 = vector.extract_strided_slice %43 {offsets = [0, 0], sizes = [8, 1], strides = [1, 1]} : vector<8x128xf32> to vector<8x1xf32>
    %46 = arith.cmpf ogt, %44, %45 : vector<8x1xf32>
    %47 = arith.extui %46 : vector<8x1xi1> to vector<8x1xi32>
    %48 = arith.sitofp %47 : vector<8x1xi32> to vector<8x1xf32>
    %49 = tpu.iota {dimensions = array<i32: 1>} : vector<8x128xi32>
    %c2_i32 = arith.constant 2 : i32
    %50 = vector.broadcast %c2_i32 : i32 to vector<8x128xi32>
    %51 = arith.cmpi eq, %49, %50 : vector<8x128xi32>
    %52 = vector.shape_cast %48 : vector<8x1xf32> to vector<8x1xf32>
    %53 = vector.broadcast %52 : vector<8x1xf32> to vector<8x128xf32>
    %54 = arith.select %51, %53, %43 : vector<8x128xi1>, vector<8x128xf32>
    %c0_16 = arith.constant 0 : index
    %c0_17 = arith.constant 0 : index
    %55 = vector.load %arg7[%c0_16, %c0_17] : memref<8x128xf32, #tpu.memory_space<vmem>>, vector<8x128xf32>
    tpu.vector_store %arg7[%c0_16, %c0_17], %54 {strides = array<i32>} : memref<8x128xf32, #tpu.memory_space<vmem>>, vector<8x128xf32>,
    return
  }
}

</mosaic_0001>

<llo_original>
// kernel: tpu_custom_call.1
$region0: #{tpu_custom_call.1}
  #allocation0 [shape = 'u32[]', space=smem, size = 0x4, offset = 0x4, fixed_abs, tag = 'smem constant byte address 0x4 - core index']
  #allocation1 [shape = 'u32[72,128]{1,0:T(1,128)}', space=vmem, size = 0x9000, scoped, tag = 'internal scratch']
  %s0 = inlined_call_operand.vmem [shape: f32[8,4], index: 0, kind: input, shape index: {}]
  %s1 = inlined_call_operand.vmem [shape: f32[4,128], index: 1, kind: input, shape index: {}]
  %s2 = inlined_call_operand.vmem [shape: f32[1,128], index: 2, kind: input, shape index: {}]
  %s3 = inlined_call_operand.hbm [shape: bf16[128,256], index: 3, kind: input, shape index: {}]
  %s4 = inlined_call_operand.vmem [shape: f32[1,256], index: 4, kind: input, shape index: {}]
  %s5 = inlined_call_operand.hbm [shape: bf16[256,128], index: 5, kind: input, shape index: {}]
  %s6 = inlined_call_operand.vmem [shape: f32[1,128], index: 6, kind: input, shape index: {}]
  %s7 = inlined_call_operand.hbm [shape: f32[8,128], index: 7, kind: output, shape index: {}]
  %s8 = sld [smem:[#allocation0]]
  $region46: #{tpu_custom_call.1} parent=0
    _
  %s10 = ssub.s32 1, %s8
  %s11 = scalar_select 0, %s10, %s8
  $region1: #{tpu_custom_call.1} parent=0
    #allocation2 [shape = 'u8[65536]{0}', space=vmem, size = 0x10000, scoped, tag = 'input window, operand 3, single buffered']
    #allocation3 [shape = 's32[1]{0}', space=sflag, size = 0x4, scoped, tag = 'scoped memory for tpu_custom_call.1']
    #allocation4 [shape = 's32[1]{0}', space=sflag, size = 0x4, scoped, tag = 'scoped memory for tpu_custom_call.1']
    #allocation5 [shape = 'u8[65536]{0}', space=vmem, size = 0x10000, scoped, tag = 'input window, operand 5, single buffered']
    #allocation6 [shape = 's32[1]{0}', space=sflag, size = 0x4, scoped, tag = 'scoped memory for tpu_custom_call.1']
    #allocation7 [shape = 'u8[4096]{0}', space=vmem, size = 0x1000, scoped, tag = 'output window, operand 0, single buffered']
    %12 = vsyncpa [#allocation3], 0
    %13 = vsyncpa [#allocation6], 0
    %14 = vsyncpa [#allocation4], 0
    // Predicated region
    $region2: #{tpu_custom_call.1} parent=1 // pred_check
      _
    $region3: #{tpu_custom_call.1} parent=1 // pred_check_branch
      %16 = sbr.rel (0) target = $region5
    $region4: #{tpu_custom_call.1} parent=1 // pred_region
      _
    $region5: #{tpu_custom_call.1} parent=1 // pred_fallthru
      _
    // Predicated region
    $region6: #{tpu_custom_call.1} parent=1 // pred_check
      _
    $region7: #{tpu_custom_call.1} parent=1 // pred_check_branch
      %18 = sbr.rel (0) target = $region9
    $region8: #{tpu_custom_call.1} parent=1 // pred_region
      _
    $region9: #{tpu_custom_call.1} parent=1 // pred_fallthru
      _
    // Predicated region
    $region10: #{tpu_custom_call.1} parent=1 // pred_check
      _
    $region11: #{tpu_custom_call.1} parent=1 // pred_check_branch
      %20 = sbr.rel (0) target = $region13
    $region12: #{tpu_custom_call.1} parent=1 // pred_region
      _
    $region13: #{tpu_custom_call.1} parent=1 // pred_fallthru
      _
    // Predicated region
    $region14: #{tpu_custom_call.1} parent=1 // pred_check
      _
    $region15: #{tpu_custom_call.1} parent=1 // pred_check_branch
      %22 = sbr.rel (0) target = $region17
    $region16: #{tpu_custom_call.1} parent=1 // pred_region
      %24 = vsyncadd [#allocation3], 0
      %s25 = sshll.u32 %s3, 4
      %s26 = int_to_ptr.hbm [resolvable:$true] %s25
      %s27 = sshll.u32 [#allocation2], 4
      %s28 = int_to_ptr.vmem [resolvable:$true] %s27
      %33 = dma.hbm_to_vmem [thread:$0]  %s26, 2048, %s28, [#allocation3], 128, 128, 8
    $region17: #{tpu_custom_call.1} parent=1 // pred_fallthru
      _
    // Predicated region
    $region18: #{tpu_custom_call.1} parent=1 // pred_check
      _
    $region19: #{tpu_custom_call.1} parent=1 // pred_check_branch
      %35 = sbr.rel (0) target = $region21
    $region20: #{tpu_custom_call.1} parent=1 // pred_region
      _
    $region21: #{tpu_custom_call.1} parent=1 // pred_fallthru
      _
    // Predicated region
    $region22: #{tpu_custom_call.1} parent=1 // pred_check
      _
    $region23: #{tpu_custom_call.1} parent=1 // pred_check_branch
      %37 = sbr.rel (0) target = $region25
    $region24: #{tpu_custom_call.1} parent=1 // pred_region
      %39 = vsyncadd [#allocation6], 0
      %s40 = sshll.u32 %s5, 4
      %s41 = int_to_ptr.hbm [resolvable:$true] %s40
      %s42 = sshll.u32 [#allocation5], 4
      %s43 = int_to_ptr.vmem [resolvable:$true] %s42
      %48 = dma.hbm_to_vmem [thread:$0]  %s41, 2048, %s43, [#allocation6], 64, 64, 4
    $region25: #{tpu_custom_call.1} parent=1 // pred_fallthru
      _
    // Predicated region
    $region26: #{tpu_custom_call.1} parent=1 // pred_check
      _
    $region27: #{tpu_custom_call.1} parent=1 // pred_check_branch
      %50 = sbr.rel (0) target = $region29
    $region28: #{tpu_custom_call.1} parent=1 // pred_region
      _
    $region29: #{tpu_custom_call.1} parent=1 // pred_fallthru
      _
    // Predicated region
    $region30: #{tpu_custom_call.1} parent=1 // pred_check
      _
    $region31: #{tpu_custom_call.1} parent=1 // pred_check_branch
      %52 = sbr.rel (0) target = $region33
    $region32: #{tpu_custom_call.1} parent=1 // pred_region
      %54 = dma.done [#allocation3], 2048
    $region33: #{tpu_custom_call.1} parent=1 // pred_fallthru
      _
    // Predicated region
    $region34: #{tpu_custom_call.1} parent=1 // pred_check
      _
    $region35: #{tpu_custom_call.1} parent=1 // pred_check_branch
      %56 = sbr.rel (0) target = $region37
    $region36: #{tpu_custom_call.1} parent=1 // pred_region
      %58 = dma.done [#allocation6], 2048
    $region37: #{tpu_custom_call.1} parent=1 // pred_fallthru
      _
    %v59 = vld [vmem:[%s0] sm:$0xff]
    %v60 = vld [vmem:[%s1] sm:$0xf]
    %v61 = vld [vmem:[%s2] sm:$0x1]
    %v62 = vld [vmem:[#allocation2] sm:$0xff]
    %v63 = vld [vmem:[#allocation2 + $0x8] sm:$0xff]
    %v64 = vld [vmem:[#allocation2 + $0x10] sm:$0xff]
    %v65 = vld [vmem:[#allocation2 + $0x18] sm:$0xff]
    %v66 = vld [vmem:[#allocation2 + $0x20] sm:$0xff]
    %v67 = vld [vmem:[#allocation2 + $0x28] sm:$0xff]
    %v68 = vld [vmem:[#allocation2 + $0x30] sm:$0xff]
    %v69 = vld [vmem:[#allocation2 + $0x38] sm:$0xff]
    %v70 = vld [vmem:[#allocation2 + $0x40] sm:$0xff]
    %v71 = vld [vmem:[#allocation2 + $0x48] sm:$0xff]
    %v72 = vld [vmem:[#allocation2 + $0x50] sm:$0xff]
    %v73 = vld [vmem:[#allocation2 + $0x58] sm:$0xff]
    %v74 = vld [vmem:[#allocation2 + $0x60] sm:$0xff]
    %v75 = vld [vmem:[#allocation2 + $0x68] sm:$0xff]
    %v76 = vld [vmem:[#allocation2 + $0x70] sm:$0xff]
    %v77 = vld [vmem:[#allocation2 + $0x78] sm:$0xff]
    %v78 = vld [vmem:[%s4] sm:$0x3]
    %v79 = vld [vmem:[#allocation5] sm:$0xf]
    %v80 = vld [vmem:[#allocation5 + $0x4] sm:$0xf]
    %v81 = vld [vmem:[#allocation5 + $0x8] sm:$0xf]
    %v82 = vld [vmem:[#allocation5 + $0xc] sm:$0xf]
    %v83 = vld [vmem:[#allocation5 + $0x10] sm:$0xf]
    %v84 = vld [vmem:[#allocation5 + $0x14] sm:$0xf]
    %v85 = vld [vmem:[#allocation5 + $0x18] sm:$0xf]
    %v86 = vld [vmem:[#allocation5 + $0x1c] sm:$0xf]
    %v87 = vld [vmem:[#allocation5 + $0x20] sm:$0xf]
    %v88 = vld [vmem:[#allocation5 + $0x24] sm:$0xf]
    %v89 = vld [vmem:[#allocation5 + $0x28] sm:$0xf]
    %v90 = vld [vmem:[#allocation5 + $0x2c] sm:$0xf]
    %v91 = vld [vmem:[#allocation5 + $0x30] sm:$0xf]
    %v92 = vld [vmem:[#allocation5 + $0x34] sm:$0xf]
    %v93 = vld [vmem:[#allocation5 + $0x38] sm:$0xf]
    %v94 = vld [vmem:[#allocation5 + $0x3c] sm:$0xf]
    %v95 = vld [vmem:[#allocation5 + $0x40] sm:$0xf]
    %v96 = vld [vmem:[#allocation5 + $0x44] sm:$0xf]
    %v97 = vld [vmem:[#allocation5 + $0x48] sm:$0xf]
    %v98 = vld [vmem:[#allocation5 + $0x4c] sm:$0xf]
    %v99 = vld [vmem:[#allocation5 + $0x50] sm:$0xf]
    %v100 = vld [vmem:[#allocation5 + $0x54] sm:$0xf]
    %v101 = vld [vmem:[#allocation5 + $0x58] sm:$0xf]
    %v102 = vld [vmem:[#allocation5 + $0x5c] sm:$0xf]
    %v103 = vld [vmem:[#allocation5 + $0x60] sm:$0xf]
    %v104 = vld [vmem:[#allocation5 + $0x64] sm:$0xf]
    %v105 = vld [vmem:[#allocation5 + $0x68] sm:$0xf]
    %v106 = vld [vmem:[#allocation5 + $0x6c] sm:$0xf]
    %v107 = vld [vmem:[#allocation5 + $0x70] sm:$0xf]
    %v108 = vld [vmem:[#allocation5 + $0x74] sm:$0xf]
    %v109 = vld [vmem:[#allocation5 + $0x78] sm:$0xf]
    %v110 = vld [vmem:[#allocation5 + $0x7c] sm:$0xf]
    %v111 = vld [vmem:[%s6] sm:$0x1]
    %113 = vset.pattern.permute.xlu0 0
    %114 = vperm.xlu0 %113, %v59
    %v115 = vpop.permute.xlu0 %114
    %v117 = vperm.slane %v60, 0
    %v118 = vmul.f32 %v115, %v117
    %v120 = vperm.slane %v61, 0
    %v122 = vadd.f32 %v120, %v118
    %123 = vset.pattern.permute.xlu0 1
    %124 = vperm.xlu0 %123, %v59
    %v125 = vpop.permute.xlu0 %124
    %v127 = vperm.slane %v60, 1
    %v128 = vmul.f32 %v125, %v127
    %v129 = vadd.f32 %v122, %v128
    %130 = vset.pattern.permute.xlu0 2
    %131 = vperm.xlu0 %130, %v59
    %v132 = vpop.permute.xlu0 %131
    %v134 = vperm.slane %v60, 2
    %v135 = vmul.f32 %v132, %v134
    %v136 = vadd.f32 %v129, %v135
    %137 = vset.pattern.permute.xlu0 3
    %138 = vperm.xlu0 %137, %v59
    %v139 = vpop.permute.xlu0 %138
    %v141 = vperm.slane %v60, 3
    %v142 = vmul.f32 %v139, %v141
    %v143 = vadd.f32 %v136, %v142
    %v144 = vmax.f32 %v143, 0.0
    %v145 = vpack.c.bf16 %v144, %v144
    %v147 = vperm.slane %v78, 0
    %v148 = vperm.slane %v78, 1
    %v167 = vunpack.c.l.b16 %v62
    %v168 = vunpack.c.h.b16 %v62
    %v169 = vunpack.c.l.b16 %v63
    %v170 = vunpack.c.h.b16 %v63
    %v171 = vunpack.c.l.b16 %v64
    %v172 = vunpack.c.h.b16 %v64
    %v173 = vunpack.c.l.b16 %v65
    %v174 = vunpack.c.h.b16 %v65
    %v175 = vunpack.c.l.b16 %v66
    %v176 = vunpack.c.h.b16 %v66
    %v177 = vunpack.c.l.b16 %v67
    %v178 = vunpack.c.h.b16 %v67
    %v179 = vunpack.c.l.b16 %v68
    %v180 = vunpack.c.h.b16 %v68
    %v181 = vunpack.c.l.b16 %v69
    %v182 = vunpack.c.h.b16 %v69
    %v183 = vunpack.c.l.b16 %v70
    %v184 = vunpack.c.h.b16 %v70
    %v185 = vunpack.c.l.b16 %v71
    %v186 = vunpack.c.h.b16 %v71
    %v187 = vunpack.c.l.b16 %v72
    %v188 = vunpack.c.h.b16 %v72
    %v189 = vunpack.c.l.b16 %v73
    %v190 = vunpack.c.h.b16 %v73
    %v191 = vunpack.c.l.b16 %v74
    %v192 = vunpack.c.h.b16 %v74
    %v193 = vunpack.c.l.b16 %v75
    %v194 = vunpack.c.h.b16 %v75
    %v195 = vunpack.c.l.b16 %v76
    %v196 = vunpack.c.h.b16 %v76
    %v197 = vunpack.c.l.b16 %v77
    %v198 = vunpack.c.h.b16 %v77
    %v199 = vpack.c.b16 %v169, %v167
    %v200 = vpack.c.b16 %v170, %v168
    %v201 = vpack.c.b16 %v173, %v171
    %v202 = vpack.c.b16 %v174, %v172
    %v203 = vpack.c.b16 %v177, %v175
    %v204 = vpack.c.b16 %v178, %v176
    %v205 = vpack.c.b16 %v181, %v179
    %v206 = vpack.c.b16 %v182, %v180
    %v207 = vpack.c.b16 %v185, %v183
    %v208 = vpack.c.b16 %v186, %v184
    %v209 = vpack.c.b16 %v189, %v187
    %v210 = vpack.c.b16 %v190, %v188
    %v211 = vpack.c.b16 %v193, %v191
    %v212 = vpack.c.b16 %v194, %v192
    %v213 = vpack.c.b16 %v197, %v195
    %v214 = vpack.c.b16 %v198, %v196
    %231 = vmatpush.bf16.msra.mxu0 %v213
    %232 = vmatpush.bf16.msra.mxu0 %v211
    %233 = vmatpush.bf16.msra.mxu0 %v209
    %234 = vmatpush.bf16.msra.mxu0 %v207
    %235 = vmatpush.bf16.msra.mxu0 %v205
    %236 = vmatpush.bf16.msra.mxu0 %v203
    %237 = vmatpush.bf16.msra.mxu0 %v201
    %238 = vmatpush.bf16.msra.mxu0 %v199
    %239 = vmatmul.bf16.gmra.mxu0 %v145
    %v240 = vpop.f32.mrf.mxu0
    %v241 = vadd.f32 %v147, %v240
    %v242 = vpop.f32.mrf.mxu0
    %243 = vdwg.mxu0
    %244 = vmatpush.bf16.msra.mxu0 %v214
    %245 = vmatpush.bf16.msra.mxu0 %v212
    %246 = vmatpush.bf16.msra.mxu0 %v210
    %247 = vmatpush.bf16.msra.mxu0 %v208
    %248 = vmatpush.bf16.msra.mxu0 %v206
    %249 = vmatpush.bf16.msra.mxu0 %v204
    %250 = vmatpush.bf16.msra.mxu0 %v202
    %251 = vmatpush.bf16.msra.mxu0 %v200
    %252 = vmatmul.bf16.gmra.mxu0 %v145
    %v253 = vpop.f32.mrf.mxu0
    %v254 = vadd.f32 %v148, %v253
    %v255 = vpop.f32.mrf.mxu0
    %256 = vdwg.mxu0
    %v257 = vmax.f32 %v241, 0.0
    %v258 = vmax.f32 %v254, 0.0
    %v259 = vpack.c.bf16 %v257, %v257
    %v260 = vpack.c.bf16 %v258, %v258
    %v262 = vperm.slane %v111, 0
    %v296 = vunpack.c.l.b16 %v79
    %v297 = vunpack.c.l.b16 %v80
    %v298 = vunpack.c.l.b16 %v81
    %v299 = vunpack.c.l.b16 %v82
    %v300 = vunpack.c.l.b16 %v83
    %v301 = vunpack.c.l.b16 %v84
    %v302 = vunpack.c.l.b16 %v85
    %v303 = vunpack.c.l.b16 %v86
    %v304 = vunpack.c.l.b16 %v87
    %v305 = vunpack.c.l.b16 %v88
    %v306 = vunpack.c.l.b16 %v89
    %v307 = vunpack.c.l.b16 %v90
    %v308 = vunpack.c.l.b16 %v91
    %v309 = vunpack.c.l.b16 %v92
    %v310 = vunpack.c.l.b16 %v93
    %v311 = vunpack.c.l.b16 %v94
    %v312 = vunpack.c.l.b16 %v95
    %v313 = vunpack.c.l.b16 %v96
    %v314 = vunpack.c.l.b16 %v97
    %v315 = vunpack.c.l.b16 %v98
    %v316 = vunpack.c.l.b16 %v99
    %v317 = vunpack.c.l.b16 %v100
    %v318 = vunpack.c.l.b16 %v101
    %v319 = vunpack.c.l.b16 %v102
    %v320 = vunpack.c.l.b16 %v103
    %v321 = vunpack.c.l.b16 %v104
    %v322 = vunpack.c.l.b16 %v105
    %v323 = vunpack.c.l.b16 %v106
    %v324 = vunpack.c.l.b16 %v107
    %v325 = vunpack.c.l.b16 %v108
    %v326 = vunpack.c.l.b16 %v109
    %v327 = vunpack.c.l.b16 %v110
    %v328 = vpack.c.b16 %v297, %v296
    %v329 = vpack.c.b16 %v299, %v298
    %v330 = vpack.c.b16 %v301, %v300
    %v331 = vpack.c.b16 %v303, %v302
    %v332 = vpack.c.b16 %v305, %v304
    %v333 = vpack.c.b16 %v307, %v306
    %v334 = vpack.c.b16 %v309, %v308
    %v335 = vpack.c.b16 %v311, %v310
    %v336 = vpack.c.b16 %v313, %v312
    %v337 = vpack.c.b16 %v315, %v314
    %v338 = vpack.c.b16 %v317, %v316
    %v339 = vpack.c.b16 %v319, %v318
    %v340 = vpack.c.b16 %v321, %v320
    %v341 = vpack.c.b16 %v323, %v322
    %v342 = vpack.c.b16 %v325, %v324
    %v343 = vpack.c.b16 %v327, %v326
    %360 = vmatpush.bf16.msra.mxu0 %v335
    %361 = vmatpush.bf16.msra.mxu0 %v334
    %362 = vmatpush.bf16.msra.mxu0 %v333
    %363 = vmatpush.bf16.msra.mxu0 %v332
    %364 = vmatpush.bf16.msra.mxu0 %v331
    %365 = vmatpush.bf16.msra.mxu0 %v330
    %366 = vmatpush.bf16.msra.mxu0 %v329
    %367 = vmatpush.bf16.msra.mxu0 %v328
    %368 = vmatmul.bf16.gmra.mxu0 %v259
    %v369 = vpop.f32.mrf.mxu0
    %v370 = vadd.f32 %v262, %v369
    %v371 = vpop.f32.mrf.mxu0
    %372 = vdwg.mxu0
    %373 = vmatpush.bf16.msra.mxu0 %v343
    %374 = vmatpush.bf16.msra.mxu0 %v342
    %375 = vmatpush.bf16.msra.mxu0 %v341
    %376 = vmatpush.bf16.msra.mxu0 %v340
    %377 = vmatpush.bf16.msra.mxu0 %v339
    %378 = vmatpush.bf16.msra.mxu0 %v338
    %379 = vmatpush.bf16.msra.mxu0 %v337
    %380 = vmatpush.bf16.msra.mxu0 %v336
    %381 = vmatmul.bf16.gmra.mxu0 %v260
    %v382 = vpop.f32.mrf.mxu0
    %v383 = vadd.f32 %v370, %v382
    %v384 = vpop.f32.mrf.mxu0
    %385 = vdwg.mxu0
    %387 = vrot.lane.b32.xlu0 %v383, 1
    %v388 = vpop.permute.xlu0 %387
    %vm390 = vcmp.gt.f32.partialorder %v383, %v388
    %v391 = vsel %vm390, 1, 0
    %v392 = vcvt.s32.f32 %v391
    %v393 = vlaneseq
    %v394 = vand.u32 %v393, 127
    %vm395 = vcmp.eq.s32.totalorder %v394, 2
    %397 = vset.pattern.permute.xlu0 1
    %398 = vperm.xlu0 %397, %v392
    %v399 = vpop.permute.xlu0 %398
    %v401 = vsel %vm395, %v399, %v383
    %402 = vst [vmem:[#allocation7] sm:$0xff] %v401
    // Predicated region
    $region38: #{tpu_custom_call.1} parent=1 // pred_check
      _
    $region39: #{tpu_custom_call.1} parent=1 // pred_check_branch
      %404 = sbr.rel (0) target = $region41
    $region40: #{tpu_custom_call.1} parent=1 // pred_region
      %406 = vsyncadd [#allocation4], 0
      %s408 = sshll.u32 [#allocation7], 4
      %s409 = int_to_ptr.vmem [resolvable:$true] %s408
      %s410 = sshll.u32 %s7, 4
      %s411 = int_to_ptr.hbm [resolvable:$true] %s410
      %413 = dma.vmem_to_hbm [thread:$0]  %s409, 128, %s411, [#allocation4]
    $region41: #{tpu_custom_call.1} parent=1 // pred_fallthru
      _
    // Predicated region
    $region42: #{tpu_custom_call.1} parent=1 // pred_check
      _
    $region43: #{tpu_custom_call.1} parent=1 // pred_check_branch
      %415 = sbr.rel (0) target = $region45
    $region44: #{tpu_custom_call.1} parent=1 // pred_region
      %417 = dma.done [#allocation4], 128
    $region45: #{tpu_custom_call.1} parent=1 // pred_fallthru
      _
    %418 = vsyncpa [#allocation3], 1
    %419 = vsyncpa [#allocation6], 1
    %420 = vsyncpa [#allocation4], 1

</llo_original>
